<compile_context>
chip_gen: v6e
topology: v6e:2x2x1
jax: 0.10.0
libtpu: 0.0.40
codegen_flags: <defaults>
</compile_context>

<pallas_src>
import jax
import jax.numpy as jnp
from jax.experimental import pallas as pl
from jax.experimental.pallas import tpu as pltpu

_LANE = 128
_SUBLANE = 8


def _round_up(x, m):
    return (x + m - 1) // m * m


def _pad2d(a, rows, cols):
    r, c = a.shape
    if (r, c) == (rows, cols):
        return a
    return jnp.pad(a, ((0, rows - r), (0, cols - c)))


def _physical_vmem_bytes():
    try:
        info = pltpu.get_tpu_info()
        for attr in ("vmem_capacity_bytes", "vmem_size_bytes", "vmem_bytes"):
            v = getattr(info, attr, None)
            if v:
                return int(v)
    except Exception:
        pass
    return 64 * 1024 * 1024  # conservative (v7x per-TC)


def _vmem_budgets():
    """Returns (scoped vmem_limit_bytes, fused-path resident budget)."""
    phys = _physical_vmem_bytes()
    if phys >= 100 * 1024 * 1024:                 # v5e / v6e: 128 MiB physical
        return 96 * 1024 * 1024, 56 * 1024 * 1024
    return 40 * 1024 * 1024, 24 * 1024 * 1024     # v7x: 64 MiB physical


def _check_buffered():
    try:
        pl.BlockSpec((8, 128), lambda i: (0, 0), pipeline_mode=pl.Buffered(1))
        return True
    except Exception:
        return False


_HAS_BUFFERED = _check_buffered()


def _const_spec(shape):
    """BlockSpec for a grid-invariant (VMEM-resident) operand; single-buffered."""
    index_map = lambda i: (0,) * len(shape)
    if _HAS_BUFFERED:
        return pl.BlockSpec(shape, index_map, pipeline_mode=pl.Buffered(1))
    return pl.BlockSpec(shape, index_map)


def _pick_tile(dim, cap, align, min_tiles=1):
    """Tile size <= cap (multiple of `align`) minimizing padding of `dim`."""
    d = _round_up(max(int(dim), 1), align)
    cap = max(_round_up(cap, align), align)
    if min_tiles > 1:
        cap = min(cap, max(_round_up(-(-d // min_tiles), align), align))
    if d <= cap:
        return d
    floor = max(align, _round_up(max(cap // 4, align), align))
    best_t, best_pad = None, None
    for t in range(floor, cap + 1, align):
        pad = _round_up(d, t) - d
        if best_pad is None or pad < best_pad or (pad == best_pad and t > best_t):
            best_pad, best_t = pad, t
    return best_t


# ----------------------------------------------------------------------------
# Path 1: whole-MLP fused kernel (weights resident in VMEM, activations on-chip)
# ----------------------------------------------------------------------------
def _make_fused_kernel(n_layers, compute_dtype):
    def kernel(*refs):
        x_ref = refs[0]
        o_ref = refs[-1]
        h = x_ref[...]                       # already in compute_dtype
        for l in range(n_layers):            # static loop: per-layer shapes differ
            w = refs[1 + 2 * l][...]
            b = refs[2 + 2 * l][...]         # (1, N) f32, broadcasts over rows
            y = jnp.dot(h.astype(compute_dtype), w,
                        preferred_element_type=jnp.float32)
            y = y + b.astype(jnp.float32)    # bias + ReLU kept in f32 (VPU-safe on v5e)
            h = jnp.maximum(y, 0.0)
        o_ref[...] = h.astype(o_ref.dtype)
    return kernel


def _fused_footprint_bytes(input_size, params, use_bf16, tm):
    widths = [input_size] + [w.shape[1] for (w, _) in params]
    widths_p = [_round_up(d, _LANE) for d in widths]
    wbytes = 2 if use_bf16 else 4
    weight_bufs = 1 if _HAS_BUFFERED else 2   # single-buffered if Buffered(1) available
    n = 0
    for l in range(len(params)):
        n += weight_bufs * (widths_p[l] * widths_p[l + 1] * wbytes + widths_p[l + 1] * 4)
    n += 2 * tm * widths_p[0] * wbytes        # double-buffered input block
    n += 2 * tm * widths_p[-1] * 4            # double-buffered output block
    n += 3 * tm * max(widths_p) * 4           # live f32 activation slabs around each dot
    n += 2 * (1 << 20)                        # compiler scratch / semaphore headroom
    return n


def densenet_forward_fused(x, params, *, use_bf16=True, vmem_limit=None, tm=None):
    if vmem_limit is None:
        vmem_limit, _ = _vmem_budgets()
    M, K0 = x.shape
    out_dtype = x.dtype
    compute_dtype = jnp.bfloat16 if use_bf16 else x.dtype
    n_layers = len(params)
    widths = [K0] + [w.shape[1] for (w, _) in params]
    widths_p = [_round_up(d, _LANE) for d in widths]

    if tm is None:
        # >=2 row tiles when the batch is big enough -> both TCs on v7x megacore.
        tm = _pick_tile(M, 256, _SUBLANE, min_tiles=2 if M >= 64 else 1)
    Mp = _round_up(M, tm)

    args = [_pad2d(x, Mp, widths_p[0]).astype(compute_dtype)]
    in_specs = [pl.BlockSpec((tm, widths_p[0]), lambda i: (i, 0))]
    for l, (w, b) in enumerate(params):
        kp, npad = widths_p[l], widths_p[l + 1]
        args.append(_pad2d(w, kp, npad).astype(compute_dtype))
        args.append(_pad2d(b.reshape(1, -1), 1, npad).astype(jnp.float32))
        # Constant block index -> DMA'd once, VMEM-resident across the grid.
        in_specs.append(_const_spec((kp, npad)))
        in_specs.append(_const_spec((1, npad)))

    out_pad = widths_p[-1]
    out = pl.pallas_call(
        _make_fused_kernel(n_layers, compute_dtype),
        out_shape=jax.ShapeDtypeStruct((Mp, out_pad), out_dtype),
        grid=(Mp // tm,),
        in_specs=in_specs,
        out_specs=pl.BlockSpec((tm, out_pad), lambda i: (i, 0)),
        compiler_params=pltpu.CompilerParams(
            dimension_semantics=("parallel",),     # rows split across TCs on v7x
            vmem_limit_bytes=vmem_limit,
        ),
    )(*args)
    return out[:M, :widths[-1]]


# ----------------------------------------------------------------------------
# Path 2: tiled per-layer linear + ReLU (for layers too large to keep resident)
# ----------------------------------------------------------------------------
def _linear_relu_tiled_kernel(x_ref, w_ref, b_ref, o_ref, acc_ref):
    k = pl.program_id(2)
    partial = jnp.dot(x_ref[...], w_ref[...], preferred_element_type=jnp.float32)

    @pl.when(k == 0)
    def _():
        acc_ref[...] = partial              # first partial: write, don't zero-init + add

    @pl.when(k > 0)
    def _():
        acc_ref[...] += partial

    @pl.when(k == pl.num_programs(2) - 1)
    def _():
        y = acc_ref[...] + b_ref[...]       # bias + ReLU in f32, once at finalize
        o_ref[...] = jnp.maximum(y, 0.0).astype(o_ref.dtype)


def linear_relu_tiled(x, w, b, *, tm=512, tn=512, tk=1024,
                      use_bf16=True, vmem_limit=None):
    """One DenseNet layer relu(x @ w + b) with a (tm, tn, tk) pipelined grid."""
    if vmem_limit is None:
        vmem_limit, _ = _vmem_budgets()
    M, K = x.shape
    K2, N = w.shape
    assert K == K2, (K, K2)
    compute_dtype = jnp.bfloat16 if use_bf16 else x.dtype

    tm = _pick_tile(M, tm, _SUBLANE)
    tn = _pick_tile(N, tn, _LANE)
    tk = _pick_tile(K, tk, _LANE)
    Mp, Np, Kp = _round_up(M, tm), _round_up(N, tn), _round_up(K, tk)

    xp = _pad2d(x, Mp, Kp).astype(compute_dtype)     # zero-padded K contributes 0
    wp = _pad2d(w, Kp, Np).astype(compute_dtype)
    bp = _pad2d(b.reshape(1, -1), 1, Np).astype(jnp.float32)

    out = pl.pallas_call(
        _linear_relu_tiled_kernel,
        out_shape=jax.ShapeDtypeStruct((Mp, Np), x.dtype),
        grid=(Mp // tm, Np // tn, Kp // tk),          # reduction axis last
        in_specs=[
            pl.BlockSpec((tm, tk), lambda i, j, k: (i, k)),
            pl.BlockSpec((tk, tn), lambda i, j, k: (k, j)),
            pl.BlockSpec((1, tn), lambda i, j, k: (0, j)),
        ],
        out_specs=pl.BlockSpec((tm, tn), lambda i, j, k: (i, j)),
        scratch_shapes=[pltpu.VMEM((tm, tn), jnp.float32)],
        compiler_params=pltpu.CompilerParams(
            dimension_semantics=("parallel", "parallel", "arbitrary"),
            vmem_limit_bytes=vmem_limit,
        ),
    )(xp, wp, bp)
    return out[:M, :N]


# ----------------------------------------------------------------------------
# DenseNet forward + reference + init
# ----------------------------------------------------------------------------
def densenet_forward(x, params, *, fuse=None, use_bf16=True):
    """Forward pass: Linear -> ReLU repeated for every layer."""
    vmem_limit, fuse_budget = _vmem_budgets()
    tm = _pick_tile(x.shape[0], 256, _SUBLANE, min_tiles=2 if x.shape[0] >= 64 else 1)
    if fuse is None:
        fuse = _fused_footprint_bytes(x.shape[1], params, use_bf16, tm) <= fuse_budget
    if fuse:
        try:
            return densenet_forward_fused(x, params, use_bf16=use_bf16,
                                          vmem_limit=vmem_limit, tm=tm)
        except Exception:
            pass   # graceful degradation (VMEM OOM / unsupported pipeline_mode)
    # TODO(synk): hybrid path — keep activations VMEM-resident across layers and
    # stream each layer's weights with pltpu.emit_pipeline (memory_space=pl.ANY)
    # for networks whose weights don't all fit resident; fall back to per-layer
    # tiled matmuls for now.
    h = x
    for w, b in params:
        h = linear_relu_tiled(h, w, b, use_bf16=use_bf16, vmem_limit=vmem_limit)
    return h


def densenet_forward_ref(x, params, *, use_bf16=True):
    """Pure-JAX reference matching the kernel numerics (bf16 inputs, f32 accum)."""
    cd = jnp.bfloat16 if use_bf16 else x.dtype
    h = x
    for w, b in params:
        y = jnp.dot(h.astype(cd).astype(jnp.float32),
                    w.astype(cd).astype(jnp.float32),
                    precision=jax.lax.Precision.HIGHEST) + b.astype(jnp.float32)
        h = jnp.maximum(y, 0.0)
    return h.astype(x.dtype)


def init_densenet_params(key, input_size, layer_sizes, dtype=jnp.float32):
    """torch.nn.Linear default init (uniform +-1/sqrt(fan_in)); W stored as (in, out)."""
    params = []
    prev = input_size
    for size in layer_sizes:
        key, kw, kb = jax.random.split(key, 3)
        bound = 1.0 / jnp.sqrt(jnp.float32(prev))
        w = jax.random.uniform(kw, (prev, size), dtype, minval=-bound, maxval=bound)
        b = jax.random.uniform(kb, (size,), dtype, minval=-bound, maxval=bound)
        params.append((w, b))
        prev = size
    return params


if __name__ == "__main__":
    key = jax.random.PRNGKey(0)
    key, kx = jax.random.split(key)

    # Toy shapes (matching the original module usage): fused single-kernel path.
    batch, input_size, layer_sizes = 2, 32, [64, 32, 16]
    x = jax.random.normal(kx, (batch, input_size), dtype=jnp.float32)
    params = init_densenet_params(key, input_size, layer_sizes)

    out = jax.block_until_ready(densenet_forward(x, params))
    ref = densenet_forward_ref(x, params)
    assert out.shape == (batch, layer_sizes[-1])
    assert jnp.allclose(out, ref, atol=2e-3, rtol=2e-3), \
        float(jnp.max(jnp.abs(out - ref)))

    # Larger shapes exercising the tiled per-layer path.
    key, kx2, kp2 = jax.random.split(key, 3)
    batch2, in2, sizes2 = 128, 384, [512, 384, 256]
    x2 = jax.random.normal(kx2, (batch2, in2), dtype=jnp.float32)
    params2 = init_densenet_params(kp2, in2, sizes2)

    out2 = jax.block_until_ready(densenet_forward(x2, params2, fuse=False))
    ref2 = densenet_forward_ref(x2, params2)
    assert out2.shape == (batch2, sizes2[-1])
    assert jnp.allclose(out2, ref2, atol=5e-3, rtol=5e-3), \
        float(jnp.max(jnp.abs(out2 - ref2)))

    # Strict-f32 parity path behind the flag.
    out3 = jax.block_until_ready(densenet_forward(x, params, use_bf16=False))
    ref3 = densenet_forward_ref(x, params, use_bf16=False)
    assert jnp.allclose(out3, ref3, atol=2e-3, rtol=2e-3), \
        float(jnp.max(jnp.abs(out3 - ref3)))

    print("KERNEL_OK")
</pallas_src>

<mosaic_0001>
module attributes {stable_mosaic.version = 11 : i64} {
  func.func @kernel(%arg0: i32, %arg1: memref<8x128xbf16, #tpu.memory_space<vmem>>, %arg2: memref<128x128xbf16, #tpu.memory_space<vmem>>, %arg3: memref<1x128xf32, #tpu.memory_space<vmem>>, %arg4: memref<128x128xbf16, #tpu.memory_space<vmem>>, %arg5: memref<1x128xf32, #tpu.memory_space<vmem>>, %arg6: memref<128x128xbf16, #tpu.memory_space<vmem>>, %arg7: memref<1x128xf32, #tpu.memory_space<vmem>>, %arg8: memref<8x128xf32, #tpu.memory_space<vmem>>) attributes {dimension_semantics = [#tpu.dimension_semantics<parallel>], iteration_bounds = array<i64: 1>, scalar_prefetch = 0 : i64, scratch_operands = 0 : i64, tpu.core_type = #tpu.core_type<tc>, window_params = [{transform_indices = @transform_0, window_bounds = array<i64: 8, 128>}, {pipeline_mode = #tpu.pipeline_mode<synchronous>, transform_indices = @transform_1, window_bounds = array<i64: 128, 128>}, {pipeline_mode = #tpu.pipeline_mode<synchronous>, transform_indices = @transform_2, window_bounds = array<i64: 1, 128>}, {pipeline_mode = #tpu.pipeline_mode<synchronous>, transform_indices = @transform_3, window_bounds = array<i64: 128, 128>}, {pipeline_mode = #tpu.pipeline_mode<synchronous>, transform_indices = @transform_4, window_bounds = array<i64: 1, 128>}, {pipeline_mode = #tpu.pipeline_mode<synchronous>, transform_indices = @transform_5, window_bounds = array<i64: 128, 128>}, {pipeline_mode = #tpu.pipeline_mode<synchronous>, transform_indices = @transform_6, window_bounds = array<i64: 1, 128>}, {transform_indices = @transform_7, window_bounds = array<i64: 8, 128>}]} {
    %c0 = arith.constant 0 : index
    %c0_0 = arith.constant 0 : index
    %0 = vector.load %arg1[%c0, %c0_0] : memref<8x128xbf16, #tpu.memory_space<vmem>>, vector<8x128xbf16>
    %c0_1 = arith.constant 0 : index
    %c0_2 = arith.constant 0 : index
    %1 = vector.load %arg2[%c0_1, %c0_2] : memref<128x128xbf16, #tpu.memory_space<vmem>>, vector<128x128xbf16>
    %c0_3 = arith.constant 0 : index
    %c0_4 = arith.constant 0 : index
    %2 = vector.load %arg3[%c0_3, %c0_4] : memref<1x128xf32, #tpu.memory_space<vmem>>, vector<1x128xf32>
    %cst = arith.constant dense<0.000000e+00> : vector<8x128xf32>
    %3 = tpu.matmul %0, %1, %cst {dimension_numbers = #tpu.dot_dimension_numbers<[1], [0], [0], [1], [0, 0, 1, 1], [], []>} : vector<8x128xbf16>, vector<128x128xbf16>, vector<8x128xf32> -> vector<8x128xf32>
    %4 = vector.broadcast %2 : vector<1x128xf32> to vector<8x128xf32>
    %5 = arith.addf %3, %4 : vector<8x128xf32>
    %cst_5 = arith.constant 0.000000e+00 : f32
    %6 = vector.broadcast %cst_5 : f32 to vector<8x128xf32>
    %7 = arith.maximumf %5, %6 : vector<8x128xf32>
    %c0_6 = arith.constant 0 : index
    %c0_7 = arith.constant 0 : index
    %8 = vector.load %arg4[%c0_6, %c0_7] : memref<128x128xbf16, #tpu.memory_space<vmem>>, vector<128x128xbf16>
    %c0_8 = arith.constant 0 : index
    %c0_9 = arith.constant 0 : index
    %9 = vector.load %arg5[%c0_8, %c0_9] : memref<1x128xf32, #tpu.memory_space<vmem>>, vector<1x128xf32>
    %10 = arith.truncf %7 : vector<8x128xf32> to vector<8x128xbf16>
    %cst_10 = arith.constant dense<0.000000e+00> : vector<8x128xf32>
    %11 = tpu.matmul %10, %8, %cst_10 {dimension_numbers = #tpu.dot_dimension_numbers<[1], [0], [0], [1], [0, 0, 1, 1], [], []>} : vector<8x128xbf16>, vector<128x128xbf16>, vector<8x128xf32> -> vector<8x128xf32>
    %12 = vector.broadcast %9 : vector<1x128xf32> to vector<8x128xf32>
    %13 = arith.addf %11, %12 : vector<8x128xf32>
    %cst_11 = arith.constant 0.000000e+00 : f32
    %14 = vector.broadcast %cst_11 : f32 to vector<8x128xf32>
    %15 = arith.maximumf %13, %14 : vector<8x128xf32>
    %c0_12 = arith.constant 0 : index
    %c0_13 = arith.constant 0 : index
    %16 = vector.load %arg6[%c0_12, %c0_13] : memref<128x128xbf16, #tpu.memory_space<vmem>>, vector<128x128xbf16>
    %c0_14 = arith.constant 0 : index
    %c0_15 = arith.constant 0 : index
    %17 = vector.load %arg7[%c0_14, %c0_15] : memref<1x128xf32, #tpu.memory_space<vmem>>, vector<1x128xf32>
    %18 = arith.truncf %15 : vector<8x128xf32> to vector<8x128xbf16>
    %cst_16 = arith.constant dense<0.000000e+00> : vector<8x128xf32>
    %19 = tpu.matmul %18, %16, %cst_16 {dimension_numbers = #tpu.dot_dimension_numbers<[1], [0], [0], [1], [0, 0, 1, 1], [], []>} : vector<8x128xbf16>, vector<128x128xbf16>, vector<8x128xf32> -> vector<8x128xf32>
    %20 = vector.broadcast %17 : vector<1x128xf32> to vector<8x128xf32>
    %21 = arith.addf %19, %20 : vector<8x128xf32>
    %cst_17 = arith.constant 0.000000e+00 : f32
    %22 = vector.broadcast %cst_17 : f32 to vector<8x128xf32>
    %23 = arith.maximumf %21, %22 : vector<8x128xf32>
    %c0_18 = arith.constant 0 : index
    %c0_19 = arith.constant 0 : index
    %24 = vector.load %arg8[%c0_18, %c0_19] : memref<8x128xf32, #tpu.memory_space<vmem>>, vector<8x128xf32>
    tpu.vector_store %arg8[%c0_18, %c0_19], %23 {strides = array<i32>} : memref<8x128xf32, #tpu.memory_space<vmem>>, vector<8x128xf32>,
    return
  }
  func.func @transform_0(%arg0: i32) -> (i32, i32) {
    %c0_i32 = arith.constant 0 : i32
    %c0_i32_0 = arith.constant 0 : i32
    return %arg0, %c0_i32 : i32, i32
  }
  func.func @transform_1(%arg0: i32) -> (i32, i32) {
    %c0_i32 = arith.constant 0 : i32
    %c0_i32_0 = arith.constant 0 : i32
    %c0_i32_1 = arith.constant 0 : i32
    return %c0_i32, %c0_i32_0 : i32, i32
  }
  func.func @transform_2(%arg0: i32) -> (i32, i32) {
    %c0_i32 = arith.constant 0 : i32
    %c0_i32_0 = arith.constant 0 : i32
    %c0_i32_1 = arith.constant 0 : i32
    return %c0_i32, %c0_i32_0 : i32, i32
  }
  func.func @transform_3(%arg0: i32) -> (i32, i32) {
    %c0_i32 = arith.constant 0 : i32
    %c0_i32_0 = arith.constant 0 : i32
    %c0_i32_1 = arith.constant 0 : i32
    return %c0_i32, %c0_i32_0 : i32, i32
  }
  func.func @transform_4(%arg0: i32) -> (i32, i32) {
    %c0_i32 = arith.constant 0 : i32
    %c0_i32_0 = arith.constant 0 : i32
    %c0_i32_1 = arith.constant 0 : i32
    return %c0_i32, %c0_i32_0 : i32, i32
  }
  func.func @transform_5(%arg0: i32) -> (i32, i32) {
    %c0_i32 = arith.constant 0 : i32
    %c0_i32_0 = arith.constant 0 : i32
    %c0_i32_1 = arith.constant 0 : i32
    return %c0_i32, %c0_i32_0 : i32, i32
  }
  func.func @transform_6(%arg0: i32) -> (i32, i32) {
    %c0_i32 = arith.constant 0 : i32
    %c0_i32_0 = arith.constant 0 : i32
    %c0_i32_1 = arith.constant 0 : i32
    return %c0_i32, %c0_i32_0 : i32, i32
  }
  func.func @transform_7(%arg0: i32) -> (i32, i32) {
    %c0_i32 = arith.constant 0 : i32
    %c0_i32_0 = arith.constant 0 : i32
    return %arg0, %c0_i32 : i32, i32
  }
}

module attributes {stable_mosaic.version = 11 : i64} {
  func.func @_linear_relu_tiled_kernel(%arg0: i32, %arg1: i32, %arg2: i32, %arg3: memref<8x128xbf16, #tpu.memory_space<vmem>>, %arg4: memref<128x128xbf16, #tpu.memory_space<vmem>>, %arg5: memref<1x128xf32, #tpu.memory_space<vmem>>, %arg6: memref<8x128xf32, #tpu.memory_space<vmem>>, %arg7: memref<8x128xf32, #tpu.memory_space<vmem>>) attributes {dimension_semantics = [#tpu.dimension_semantics<parallel>, #tpu.dimension_semantics<parallel>, #tpu.dimension_semantics<arbitrary>], iteration_bounds = array<i64: 1, 1, 1>, scalar_prefetch = 0 : i64, scratch_operands = 1 : i64, tpu.core_type = #tpu.core_type<tc>, window_params = [{transform_indices = @transform_0, window_bounds = array<i64: 8, 128>}, {transform_indices = @transform_1, window_bounds = array<i64: 128, 128>}, {transform_indices = @transform_2, window_bounds = array<i64: 1, 128>}, {transform_indices = @transform_3, window_bounds = array<i64: 8, 128>}]} {
    %c0 = arith.constant 0 : index
    %c0_0 = arith.constant 0 : index
    %0 = vector.load %arg3[%c0, %c0_0] : memref<8x128xbf16, #tpu.memory_space<vmem>>, vector<8x128xbf16>
    %c0_1 = arith.constant 0 : index
    %c0_2 = arith.constant 0 : index
    %1 = vector.load %arg4[%c0_1, %c0_2] : memref<128x128xbf16, #tpu.memory_space<vmem>>, vector<128x128xbf16>
    %cst = arith.constant dense<0.000000e+00> : vector<8x128xf32>
    %2 = tpu.matmul %0, %1, %cst {dimension_numbers = #tpu.dot_dimension_numbers<[1], [0], [0], [1], [0, 0, 1, 1], [], []>} : vector<8x128xbf16>, vector<128x128xbf16>, vector<8x128xf32> -> vector<8x128xf32>
    %c0_i32 = arith.constant 0 : i32
    %3 = arith.cmpi eq, %arg2, %c0_i32 : i32
    %4 = arith.extui %3 : i1 to i32
    %c0_i32_3 = arith.constant 0 : i32
    %5 = arith.cmpi ne, %4, %c0_i32_3 : i32
    scf.if %5 {
      %c0_8 = arith.constant 0 : index
      %c0_9 = arith.constant 0 : index
      %12 = vector.load %arg7[%c0_8, %c0_9] : memref<8x128xf32, #tpu.memory_space<vmem>>, vector<8x128xf32>
      tpu.vector_store %arg7[%c0_8, %c0_9], %2 {strides = array<i32>} : memref<8x128xf32, #tpu.memory_space<vmem>>, vector<8x128xf32>,
    } else {
    }
    %c0_i32_4 = arith.constant 0 : i32
    %6 = arith.cmpi sgt, %arg2, %c0_i32_4 : i32
    %7 = arith.extui %6 : i1 to i32
    %c0_i32_5 = arith.constant 0 : i32
    %8 = arith.cmpi ne, %7, %c0_i32_5 : i32
    scf.if %8 {
      %c0_8 = arith.constant 0 : index
      %c0_9 = arith.constant 0 : index
      %12 = vector.load %arg7[%c0_8, %c0_9] : memref<8x128xf32, #tpu.memory_space<vmem>>, vector<8x128xf32>
      %13 = arith.addf %12, %2 : vector<8x128xf32>
      %c0_10 = arith.constant 0 : index
      %c0_11 = arith.constant 0 : index
      %14 = vector.load %arg7[%c0_10, %c0_11] : memref<8x128xf32, #tpu.memory_space<vmem>>, vector<8x128xf32>
      tpu.vector_store %arg7[%c0_10, %c0_11], %13 {strides = array<i32>} : memref<8x128xf32, #tpu.memory_space<vmem>>, vector<8x128xf32>,
    } else {
    }
    %c0_i32_6 = arith.constant 0 : i32
    %9 = arith.cmpi eq, %arg2, %c0_i32_6 : i32
    %10 = arith.extui %9 : i1 to i32
    %c0_i32_7 = arith.constant 0 : i32
    %11 = arith.cmpi ne, %10, %c0_i32_7 : i32
    scf.if %11 {
      %c0_8 = arith.constant 0 : index
      %c0_9 = arith.constant 0 : index
      %12 = vector.load %arg7[%c0_8, %c0_9] : memref<8x128xf32, #tpu.memory_space<vmem>>, vector<8x128xf32>
      %c0_10 = arith.constant 0 : index
      %c0_11 = arith.constant 0 : index
      %13 = vector.load %arg5[%c0_10, %c0_11] : memref<1x128xf32, #tpu.memory_space<vmem>>, vector<1x128xf32>
      %14 = vector.broadcast %13 : vector<1x128xf32> to vector<8x128xf32>
      %15 = arith.addf %12, %14 : vector<8x128xf32>
      %cst_12 = arith.constant 0.000000e+00 : f32
      %16 = vector.broadcast %cst_12 : f32 to vector<8x128xf32>
      %17 = arith.maximumf %15, %16 : vector<8x128xf32>
      %c0_13 = arith.constant 0 : index
      %c0_14 = arith.constant 0 : index
      %18 = vector.load %arg6[%c0_13, %c0_14] : memref<8x128xf32, #tpu.memory_space<vmem>>, vector<8x128xf32>
      tpu.vector_store %arg6[%c0_13, %c0_14], %17 {strides = array<i32>} : memref<8x128xf32, #tpu.memory_space<vmem>>, vector<8x128xf32>,
    } else {
    }
    return
  }
  func.func @transform_0(%arg0: i32, %arg1: i32, %arg2: i32) -> (i32, i32) {
    %c0_i32 = arith.constant 0 : i32
    return %arg0, %arg2 : i32, i32
  }
  func.func @transform_1(%arg0: i32, %arg1: i32, %arg2: i32) -> (i32, i32) {
    %c0_i32 = arith.constant 0 : i32
    return %arg2, %arg1 : i32, i32
  }
  func.func @transform_2(%arg0: i32, %arg1: i32, %arg2: i32) -> (i32, i32) {
    %c0_i32 = arith.constant 0 : i32
    %c0_i32_0 = arith.constant 0 : i32
    return %c0_i32, %arg1 : i32, i32
  }
  func.func @transform_3(%arg0: i32, %arg1: i32, %arg2: i32) -> (i32, i32) {
    %c0_i32 = arith.constant 0 : i32
    return %arg0, %arg1 : i32, i32
  }
}

</mosaic_0001>

<llo_original>
// kernel: tpu_custom_call.1
$region0: #{tpu_custom_call.1}
  #allocation0 [shape = 'u32[]', space=smem, size = 0x4, offset = 0x4, fixed_abs, tag = 'smem constant byte address 0x4 - core index']
  #allocation1 [shape = 'u32[144,128]{1,0:T(1,128)}', space=vmem, size = 0x12000, scoped, tag = 'internal scratch']
  %s0 = inlined_call_operand.hbm [shape: bf16[8,128], index: 0, kind: input, shape index: {}]
  %s1 = inlined_call_operand.hbm [shape: bf16[128,128], index: 1, kind: input, shape index: {}]
  %s2 = inlined_call_operand.vmem [shape: f32[1,128], index: 2, kind: input, shape index: {}]
  %s3 = inlined_call_operand.hbm [shape: bf16[128,128], index: 3, kind: input, shape index: {}]
  %s4 = inlined_call_operand.vmem [shape: f32[1,128], index: 4, kind: input, shape index: {}]
  %s5 = inlined_call_operand.hbm [shape: bf16[128,128], index: 5, kind: input, shape index: {}]
  %s6 = inlined_call_operand.vmem [shape: f32[1,128], index: 6, kind: input, shape index: {}]
  %s7 = inlined_call_operand.hbm [shape: f32[8,128], index: 7, kind: output, shape index: {}]
  %s8 = sld [smem:[#allocation0]]
  $region54: #{tpu_custom_call.1} parent=0
    _
  %s10 = ssub.s32 1, %s8
  %s11 = scalar_select 0, %s10, %s8
  $region1: #{tpu_custom_call.1} parent=0
    #allocation2 [shape = 'u8[2048]{0}', space=vmem, size = 0x800, scoped, tag = 'input window, operand 0, single buffered']
    #allocation3 [shape = 's32[1]{0}', space=sflag, size = 0x4, scoped, tag = 'scoped memory for tpu_custom_call.1']
    #allocation4 [shape = 's32[1]{0}', space=sflag, size = 0x4, scoped, tag = 'scoped memory for tpu_custom_call.1']
    #allocation5 [shape = 'u8[32768]{0}', space=vmem, size = 0x8000, scoped, tag = 'input window, operand 1, single buffered']
    #allocation6 [shape = 's32[1]{0}', space=sflag, size = 0x4, scoped, tag = 'scoped memory for tpu_custom_call.1']
    #allocation7 [shape = 'u8[32768]{0}', space=vmem, size = 0x8000, scoped, tag = 'input window, operand 3, single buffered']
    #allocation8 [shape = 'u8[32768]{0}', space=vmem, size = 0x8000, scoped, tag = 'input window, operand 5, single buffered']
    #allocation9 [shape = 's32[1]{0}', space=sflag, size = 0x4, scoped, tag = 'scoped memory for tpu_custom_call.1']
    #allocation10 [shape = 'u8[4096]{0}', space=vmem, size = 0x1000, scoped, tag = 'output window, operand 0, single buffered']
    %12 = vsyncpa [#allocation3], 0
    %13 = vsyncpa [#allocation6], 0
    %14 = vsyncpa [#allocation9], 0
    %15 = vsyncpa [#allocation4], 0
    // Predicated region
    $region2: #{tpu_custom_call.1} parent=1 // pred_check
      _
    $region3: #{tpu_custom_call.1} parent=1 // pred_check_branch
      %17 = sbr.rel (0) target = $region5
    $region4: #{tpu_custom_call.1} parent=1 // pred_region
      %s19 = ssub.s32 64, 64
      %20 = vsyncadd [#allocation3], %s19
      %s22 = sshll.u32 [#allocation2], 4
      %s23 = int_to_ptr.vmem [resolvable:$true] %s22
      %25 = dma.hbm_to_vmem [thread:$0]  %s0, 64, %s23, [#allocation3]
    $region5: #{tpu_custom_call.1} parent=1 // pred_fallthru
      _
    // Predicated region
    $region6: #{tpu_custom_call.1} parent=1 // pred_check
      _
    $region7: #{tpu_custom_call.1} parent=1 // pred_check_branch
      %27 = sbr.rel (0) target = $region9
    $region8: #{tpu_custom_call.1} parent=1 // pred_region
      %s29 = ssub.s32 1024, 1024
      %30 = vsyncadd [#allocation6], %s29
      %s31 = sshll.u32 [#allocation5], 4
      %s32 = int_to_ptr.vmem [resolvable:$true] %s31
      %37 = dma.hbm_to_vmem [thread:$0]  %s1, 1024, %s32, [#allocation6], 64, 64, 4
    $region9: #{tpu_custom_call.1} parent=1 // pred_fallthru
      _
    // Predicated region
    $region10: #{tpu_custom_call.1} parent=1 // pred_check
      _
    $region11: #{tpu_custom_call.1} parent=1 // pred_check_branch
      %39 = sbr.rel (0) target = $region13
    $region12: #{tpu_custom_call.1} parent=1 // pred_region
      _
    $region13: #{tpu_custom_call.1} parent=1 // pred_fallthru
      _
    // Predicated region
    $region14: #{tpu_custom_call.1} parent=1 // pred_check
      _
    $region15: #{tpu_custom_call.1} parent=1 // pred_check_branch
      %41 = sbr.rel (0) target = $region17
    $region16: #{tpu_custom_call.1} parent=1 // pred_region
      %s43 = ssub.s32 1024, 1024
      %44 = vsyncadd [#allocation6], %s43
      %s45 = sshll.u32 [#allocation7], 4
      %s46 = int_to_ptr.vmem [resolvable:$true] %s45
      %51 = dma.hbm_to_vmem [thread:$0]  %s3, 1024, %s46, [#allocation6], 64, 64, 4
    $region17: #{tpu_custom_call.1} parent=1 // pred_fallthru
      _
    // Predicated region
    $region18: #{tpu_custom_call.1} parent=1 // pred_check
      _
    $region19: #{tpu_custom_call.1} parent=1 // pred_check_branch
      %53 = sbr.rel (0) target = $region21
    $region20: #{tpu_custom_call.1} parent=1 // pred_region
      _
    $region21: #{tpu_custom_call.1} parent=1 // pred_fallthru
      _
    // Predicated region
    $region22: #{tpu_custom_call.1} parent=1 // pred_check
      _
    $region23: #{tpu_custom_call.1} parent=1 // pred_check_branch
      %55 = sbr.rel (0) target = $region25
    $region24: #{tpu_custom_call.1} parent=1 // pred_region
      %s57 = ssub.s32 1024, 1024
      %58 = vsyncadd [#allocation9], %s57
      %s59 = sshll.u32 [#allocation8], 4
      %s60 = int_to_ptr.vmem [resolvable:$true] %s59
      %65 = dma.hbm_to_vmem [thread:$0]  %s5, 1024, %s60, [#allocation9], 64, 64, 4
    $region25: #{tpu_custom_call.1} parent=1 // pred_fallthru
      _
    // Predicated region
    $region26: #{tpu_custom_call.1} parent=1 // pred_check
      _
    $region27: #{tpu_custom_call.1} parent=1 // pred_check_branch
      %67 = sbr.rel (0) target = $region29
    $region28: #{tpu_custom_call.1} parent=1 // pred_region
      _
    $region29: #{tpu_custom_call.1} parent=1 // pred_fallthru
      _
    // Predicated region
    $region30: #{tpu_custom_call.1} parent=1 // pred_check
      _
    $region31: #{tpu_custom_call.1} parent=1 // pred_check_branch
      %69 = sbr.rel (0) target = $region33
    $region32: #{tpu_custom_call.1} parent=1 // pred_region
      %70 = dma.done [#allocation3], 64
    $region33: #{tpu_custom_call.1} parent=1 // pred_fallthru
      _
    // Predicated region
    $region34: #{tpu_custom_call.1} parent=1 // pred_check
      _
    $region35: #{tpu_custom_call.1} parent=1 // pred_check_branch
      %72 = sbr.rel (0) target = $region37
    $region36: #{tpu_custom_call.1} parent=1 // pred_region
      %73 = dma.done [#allocation6], 1024
    $region37: #{tpu_custom_call.1} parent=1 // pred_fallthru
      _
    // Predicated region
    $region38: #{tpu_custom_call.1} parent=1 // pred_check
      _
    $region39: #{tpu_custom_call.1} parent=1 // pred_check_branch
      %75 = sbr.rel (0) target = $region41
    $region40: #{tpu_custom_call.1} parent=1 // pred_region
      %76 = dma.done [#allocation6], 1024
    $region41: #{tpu_custom_call.1} parent=1 // pred_fallthru
      _
    // Predicated region
    $region42: #{tpu_custom_call.1} parent=1 // pred_check
      _
    $region43: #{tpu_custom_call.1} parent=1 // pred_check_branch
      %78 = sbr.rel (0) target = $region45
    $region44: #{tpu_custom_call.1} parent=1 // pred_region
      %79 = dma.done [#allocation9], 1024
    $region45: #{tpu_custom_call.1} parent=1 // pred_fallthru
      _
    %v81 = vld [vmem:[#allocation2] sm:$0xf]
    %v82 = vld [vmem:[#allocation5] sm:$0xf]
    %v83 = vld [vmem:[#allocation5 + $0x4] sm:$0xf]
    %v84 = vld [vmem:[#allocation5 + $0x8] sm:$0xf]
    %v85 = vld [vmem:[#allocation5 + $0xc] sm:$0xf]
    %v86 = vld [vmem:[#allocation5 + $0x10] sm:$0xf]
    %v87 = vld [vmem:[#allocation5 + $0x14] sm:$0xf]
    %v88 = vld [vmem:[#allocation5 + $0x18] sm:$0xf]
    %v89 = vld [vmem:[#allocation5 + $0x1c] sm:$0xf]
    %v90 = vld [vmem:[#allocation5 + $0x20] sm:$0xf]
    %v91 = vld [vmem:[#allocation5 + $0x24] sm:$0xf]
    %v92 = vld [vmem:[#allocation5 + $0x28] sm:$0xf]
    %v93 = vld [vmem:[#allocation5 + $0x2c] sm:$0xf]
    %v94 = vld [vmem:[#allocation5 + $0x30] sm:$0xf]
    %v95 = vld [vmem:[#allocation5 + $0x34] sm:$0xf]
    %v96 = vld [vmem:[#allocation5 + $0x38] sm:$0xf]
    %v97 = vld [vmem:[#allocation5 + $0x3c] sm:$0xf]
    %v98 = vld [vmem:[%s2] sm:$0x1]
    %v100 = vlaneseq
    %v101 = vshrl.u32 %v100, 7
    %v102 = vsub.s32 0, %v101
    %v103 = vrot.slane %v98, %v102
    %v121 = vunpack.c.l.b16 %v82
    %v122 = vunpack.c.l.b16 %v83
    %v123 = vunpack.c.l.b16 %v84
    %v124 = vunpack.c.l.b16 %v85
    %v125 = vunpack.c.l.b16 %v86
    %v126 = vunpack.c.l.b16 %v87
    %v127 = vunpack.c.l.b16 %v88
    %v128 = vunpack.c.l.b16 %v89
    %v129 = vunpack.c.l.b16 %v90
    %v130 = vunpack.c.l.b16 %v91
    %v131 = vunpack.c.l.b16 %v92
    %v132 = vunpack.c.l.b16 %v93
    %v133 = vunpack.c.l.b16 %v94
    %v134 = vunpack.c.l.b16 %v95
    %v135 = vunpack.c.l.b16 %v96
    %v136 = vunpack.c.l.b16 %v97
    %v137 = vpack.c.b16 %v122, %v121
    %v138 = vpack.c.b16 %v124, %v123
    %v139 = vpack.c.b16 %v126, %v125
    %v140 = vpack.c.b16 %v128, %v127
    %v141 = vpack.c.b16 %v130, %v129
    %v142 = vpack.c.b16 %v132, %v131
    %v143 = vpack.c.b16 %v134, %v133
    %v144 = vpack.c.b16 %v136, %v135
    %153 = vmatprep.subr.bf16.mxu0 0
    %154 = vmatpush1.bf16.msra.mxu0 %v144
    %155 = vmatprep.subr.bf16.mxu0 0
    %156 = vmatpush1.bf16.msra.mxu0 %v143
    %157 = vmatprep.subr.bf16.mxu0 0
    %158 = vmatpush1.bf16.msra.mxu0 %v142
    %159 = vmatprep.subr.bf16.mxu0 0
    %160 = vmatpush1.bf16.msra.mxu0 %v141
    %161 = vmatprep.subr.bf16.mxu0 0
    %162 = vmatpush1.bf16.msra.mxu0 %v140
    %163 = vmatprep.subr.bf16.mxu0 0
    %164 = vmatpush1.bf16.msra.mxu0 %v139
    %165 = vmatprep.subr.bf16.mxu0 0
    %166 = vmatpush1.bf16.msra.mxu0 %v138
    %167 = vmatprep.subr.bf16.mxu0 0
    %168 = vmatpush1.bf16.msra.mxu0 %v137
    %169 = vmatprep.subr.bf16.mxu0 0
    %170 = vmatpush2.bf16.msra.mxu0 0
    %171 = vmatprep.subr.bf16.mxu0 0
    %172 = vmatpush2.bf16.msra.mxu0 0
    %173 = vmatprep.subr.bf16.mxu0 0
    %174 = vmatpush2.bf16.msra.mxu0 0
    %175 = vmatprep.subr.bf16.mxu0 0
    %176 = vmatpush2.bf16.msra.mxu0 0
    %177 = vmatprep.subr.bf16.mxu0 0
    %178 = vmatpush2.bf16.msra.mxu0 0
    %179 = vmatprep.subr.bf16.mxu0 0
    %180 = vmatpush2.bf16.msra.mxu0 0
    %181 = vmatprep.subr.bf16.mxu0 0
    %182 = vmatpush2.bf16.msra.mxu0 0
    %183 = vmatprep.subr.bf16.mxu0 0
    %184 = vmatpush2.bf16.msra.mxu0 0
    %185 = vmatprep.mubr.bf16.mxu0 0
    %186 = vmatmul.mubr.bf16.gmra.mxu0 %v81
    %v187 = vpop.f32.mrf.mxu0
    %v188 = vadd.f32 %v103, %v187
    %v189 = vpop.f32.mrf.mxu0
    %v190 = vpop.f32.mrf.mxu0
    %v191 = vpop.f32.mrf.mxu0
    %192 = vdwg.mxu0
    %v193 = vmax.f32 %v188, 0.0
    %v194 = vld [vmem:[#allocation7] sm:$0xf]
    %v195 = vld [vmem:[#allocation7 + $0x4] sm:$0xf]
    %v196 = vld [vmem:[#allocation7 + $0x8] sm:$0xf]
    %v197 = vld [vmem:[#allocation7 + $0xc] sm:$0xf]
    %v198 = vld [vmem:[#allocation7 + $0x10] sm:$0xf]
    %v199 = vld [vmem:[#allocation7 + $0x14] sm:$0xf]
    %v200 = vld [vmem:[#allocation7 + $0x18] sm:$0xf]
    %v201 = vld [vmem:[#allocation7 + $0x1c] sm:$0xf]
    %v202 = vld [vmem:[#allocation7 + $0x20] sm:$0xf]
    %v203 = vld [vmem:[#allocation7 + $0x24] sm:$0xf]
    %v204 = vld [vmem:[#allocation7 + $0x28] sm:$0xf]
    %v205 = vld [vmem:[#allocation7 + $0x2c] sm:$0xf]
    %v206 = vld [vmem:[#allocation7 + $0x30] sm:$0xf]
    %v207 = vld [vmem:[#allocation7 + $0x34] sm:$0xf]
    %v208 = vld [vmem:[#allocation7 + $0x38] sm:$0xf]
    %v209 = vld [vmem:[#allocation7 + $0x3c] sm:$0xf]
    %v210 = vld [vmem:[%s4] sm:$0x1]
    %v211 = vpack.c.bf16 %v193, %v193
    %v213 = vlaneseq
    %v214 = vshrl.u32 %v213, 7
    %v215 = vsub.s32 0, %v214
    %v216 = vrot.slane %v210, %v215
    %v234 = vunpack.c.l.b16 %v194
    %v235 = vunpack.c.l.b16 %v195
    %v236 = vunpack.c.l.b16 %v196
    %v237 = vunpack.c.l.b16 %v197
    %v238 = vunpack.c.l.b16 %v198
    %v239 = vunpack.c.l.b16 %v199
    %v240 = vunpack.c.l.b16 %v200
    %v241 = vunpack.c.l.b16 %v201
    %v242 = vunpack.c.l.b16 %v202
    %v243 = vunpack.c.l.b16 %v203
    %v244 = vunpack.c.l.b16 %v204
    %v245 = vunpack.c.l.b16 %v205
    %v246 = vunpack.c.l.b16 %v206
    %v247 = vunpack.c.l.b16 %v207
    %v248 = vunpack.c.l.b16 %v208
    %v249 = vunpack.c.l.b16 %v209
    %v250 = vpack.c.b16 %v235, %v234
    %v251 = vpack.c.b16 %v237, %v236
    %v252 = vpack.c.b16 %v239, %v238
    %v253 = vpack.c.b16 %v241, %v240
    %v254 = vpack.c.b16 %v243, %v242
    %v255 = vpack.c.b16 %v245, %v244
    %v256 = vpack.c.b16 %v247, %v246
    %v257 = vpack.c.b16 %v249, %v248
    %266 = vmatprep.subr.bf16.mxu0 0
    %267 = vmatpush1.bf16.msra.mxu0 %v257
    %268 = vmatprep.subr.bf16.mxu0 0
    %269 = vmatpush1.bf16.msra.mxu0 %v256
    %270 = vmatprep.subr.bf16.mxu0 0
    %271 = vmatpush1.bf16.msra.mxu0 %v255
    %272 = vmatprep.subr.bf16.mxu0 0
    %273 = vmatpush1.bf16.msra.mxu0 %v254
    %274 = vmatprep.subr.bf16.mxu0 0
    %275 = vmatpush1.bf16.msra.mxu0 %v253
    %276 = vmatprep.subr.bf16.mxu0 0
    %277 = vmatpush1.bf16.msra.mxu0 %v252
    %278 = vmatprep.subr.bf16.mxu0 0
    %279 = vmatpush1.bf16.msra.mxu0 %v251
    %280 = vmatprep.subr.bf16.mxu0 0
    %281 = vmatpush1.bf16.msra.mxu0 %v250
    %282 = vmatprep.subr.bf16.mxu0 0
    %283 = vmatpush2.bf16.msra.mxu0 0
    %284 = vmatprep.subr.bf16.mxu0 0
    %285 = vmatpush2.bf16.msra.mxu0 0
    %286 = vmatprep.subr.bf16.mxu0 0
    %287 = vmatpush2.bf16.msra.mxu0 0
    %288 = vmatprep.subr.bf16.mxu0 0
    %289 = vmatpush2.bf16.msra.mxu0 0
    %290 = vmatprep.subr.bf16.mxu0 0
    %291 = vmatpush2.bf16.msra.mxu0 0
    %292 = vmatprep.subr.bf16.mxu0 0
    %293 = vmatpush2.bf16.msra.mxu0 0
    %294 = vmatprep.subr.bf16.mxu0 0
    %295 = vmatpush2.bf16.msra.mxu0 0
    %296 = vmatprep.subr.bf16.mxu0 0
    %297 = vmatpush2.bf16.msra.mxu0 0
    %298 = vmatprep.mubr.bf16.mxu0 0
    %299 = vmatmul.mubr.bf16.gmra.mxu0 %v211
    %v300 = vpop.f32.mrf.mxu0
    %v301 = vadd.f32 %v216, %v300
    %v302 = vpop.f32.mrf.mxu0
    %v303 = vpop.f32.mrf.mxu0
    %v304 = vpop.f32.mrf.mxu0
    %305 = vdwg.mxu0
    %v306 = vmax.f32 %v301, 0.0
    %v307 = vld [vmem:[#allocation8] sm:$0xf]
    %v308 = vld [vmem:[#allocation8 + $0x4] sm:$0xf]
    %v309 = vld [vmem:[#allocation8 + $0x8] sm:$0xf]
    %v310 = vld [vmem:[#allocation8 + $0xc] sm:$0xf]
    %v311 = vld [vmem:[#allocation8 + $0x10] sm:$0xf]
    %v312 = vld [vmem:[#allocation8 + $0x14] sm:$0xf]
    %v313 = vld [vmem:[#allocation8 + $0x18] sm:$0xf]
    %v314 = vld [vmem:[#allocation8 + $0x1c] sm:$0xf]
    %v315 = vld [vmem:[#allocation8 + $0x20] sm:$0xf]
    %v316 = vld [vmem:[#allocation8 + $0x24] sm:$0xf]
    %v317 = vld [vmem:[#allocation8 + $0x28] sm:$0xf]
    %v318 = vld [vmem:[#allocation8 + $0x2c] sm:$0xf]
    %v319 = vld [vmem:[#allocation8 + $0x30] sm:$0xf]
    %v320 = vld [vmem:[#allocation8 + $0x34] sm:$0xf]
    %v321 = vld [vmem:[#allocation8 + $0x38] sm:$0xf]
    %v322 = vld [vmem:[#allocation8 + $0x3c] sm:$0xf]
    %v323 = vld [vmem:[%s6] sm:$0x1]
    %v324 = vpack.c.bf16 %v306, %v306
    %v326 = vlaneseq
    %v327 = vshrl.u32 %v326, 7
    %v328 = vsub.s32 0, %v327
    %v329 = vrot.slane %v323, %v328
    %v347 = vunpack.c.l.b16 %v307
    %v348 = vunpack.c.l.b16 %v308
    %v349 = vunpack.c.l.b16 %v309
    %v350 = vunpack.c.l.b16 %v310
    %v351 = vunpack.c.l.b16 %v311
    %v352 = vunpack.c.l.b16 %v312
    %v353 = vunpack.c.l.b16 %v313
    %v354 = vunpack.c.l.b16 %v314
    %v355 = vunpack.c.l.b16 %v315
    %v356 = vunpack.c.l.b16 %v316
    %v357 = vunpack.c.l.b16 %v317
    %v358 = vunpack.c.l.b16 %v318
    %v359 = vunpack.c.l.b16 %v319
    %v360 = vunpack.c.l.b16 %v320
    %v361 = vunpack.c.l.b16 %v321
    %v362 = vunpack.c.l.b16 %v322
    %v363 = vpack.c.b16 %v348, %v347
    %v364 = vpack.c.b16 %v350, %v349
    %v365 = vpack.c.b16 %v352, %v351
    %v366 = vpack.c.b16 %v354, %v353
    %v367 = vpack.c.b16 %v356, %v355
    %v368 = vpack.c.b16 %v358, %v357
    %v369 = vpack.c.b16 %v360, %v359
    %v370 = vpack.c.b16 %v362, %v361
    %379 = vmatprep.subr.bf16.mxu0 0
    %380 = vmatpush1.bf16.msra.mxu0 %v370
    %381 = vmatprep.subr.bf16.mxu0 0
    %382 = vmatpush1.bf16.msra.mxu0 %v369
    %383 = vmatprep.subr.bf16.mxu0 0
    %384 = vmatpush1.bf16.msra.mxu0 %v368
    %385 = vmatprep.subr.bf16.mxu0 0
    %386 = vmatpush1.bf16.msra.mxu0 %v367
    %387 = vmatprep.subr.bf16.mxu0 0
    %388 = vmatpush1.bf16.msra.mxu0 %v366
    %389 = vmatprep.subr.bf16.mxu0 0
    %390 = vmatpush1.bf16.msra.mxu0 %v365
    %391 = vmatprep.subr.bf16.mxu0 0
    %392 = vmatpush1.bf16.msra.mxu0 %v364
    %393 = vmatprep.subr.bf16.mxu0 0
    %394 = vmatpush1.bf16.msra.mxu0 %v363
    %395 = vmatprep.subr.bf16.mxu0 0
    %396 = vmatpush2.bf16.msra.mxu0 0
    %397 = vmatprep.subr.bf16.mxu0 0
    %398 = vmatpush2.bf16.msra.mxu0 0
    %399 = vmatprep.subr.bf16.mxu0 0
    %400 = vmatpush2.bf16.msra.mxu0 0
    %401 = vmatprep.subr.bf16.mxu0 0
    %402 = vmatpush2.bf16.msra.mxu0 0
    %403 = vmatprep.subr.bf16.mxu0 0
    %404 = vmatpush2.bf16.msra.mxu0 0
    %405 = vmatprep.subr.bf16.mxu0 0
    %406 = vmatpush2.bf16.msra.mxu0 0
    %407 = vmatprep.subr.bf16.mxu0 0
    %408 = vmatpush2.bf16.msra.mxu0 0
    %409 = vmatprep.subr.bf16.mxu0 0
    %410 = vmatpush2.bf16.msra.mxu0 0
    %411 = vmatprep.mubr.bf16.mxu0 0
    %412 = vmatmul.mubr.bf16.gmra.mxu0 %v324
    %v413 = vpop.f32.mrf.mxu0
    %v414 = vadd.f32 %v329, %v413
    %v415 = vpop.f32.mrf.mxu0
    %v416 = vpop.f32.mrf.mxu0
    %v417 = vpop.f32.mrf.mxu0
    %418 = vdwg.mxu0
    %v419 = vmax.f32 %v414, 0.0
    %420 = vst [vmem:[#allocation10] sm:$0xff] %v419
    // Predicated region
    $region46: #{tpu_custom_call.1} parent=1 // pred_check
      _
    $region47: #{tpu_custom_call.1} parent=1 // pred_check_branch
      %422 = sbr.rel (0) target = $region49
    $region48: #{tpu_custom_call.1} parent=1 // pred_region
      %s424 = ssub.s32 128, 128
      %425 = vsyncadd [#allocation4], %s424
      %s427 = sshll.u32 [#allocation10], 4
      %s428 = int_to_ptr.vmem [resolvable:$true] %s427
      %430 = dma.vmem_to_hbm [thread:$0]  %s428, 128, %s7, [#allocation4]
    $region49: #{tpu_custom_call.1} parent=1 // pred_fallthru
      _
    // Predicated region
    $region50: #{tpu_custom_call.1} parent=1 // pred_check
      _
    $region51: #{tpu_custom_call.1} parent=1 // pred_check_branch
      %432 = sbr.rel (0) target = $region53
    $region52: #{tpu_custom_call.1} parent=1 // pred_region
      %433 = dma.done [#allocation4], 128
    $region53: #{tpu_custom_call.1} parent=1 // pred_fallthru
      _
    %434 = vsyncpa [#allocation3], 1
    %435 = vsyncpa [#allocation6], 1
    %436 = vsyncpa [#allocation9], 1
    %437 = vsyncpa [#allocation4], 1

// kernel: tpu_custom_call.1
$region0: #{tpu_custom_call.1}
  #allocation0 [shape = 'u32[]', space=smem, size = 0x4, offset = 0x4, fixed_abs, tag = 'smem constant byte address 0x4 - core index']
  #allocation1 [shape = 'u32[144,128]{1,0:T(1,128)}', space=vmem, size = 0x12000, scoped, tag = 'internal scratch']
  #allocation2 [shape = 'f32[8,128]{1,0:T(8,128)}', space=vmem, size = 0x1000, scoped, tag = 'scratch operand']
  %s0 = inlined_call_operand.hbm [shape: bf16[8,128], index: 0, kind: input, shape index: {}]
  %s1 = inlined_call_operand.hbm [shape: bf16[128,128], index: 1, kind: input, shape index: {}]
  %s2 = inlined_call_operand.vmem [shape: f32[1,128], index: 2, kind: input, shape index: {}]
  %s3 = inlined_call_operand.hbm [shape: f32[8,128], index: 3, kind: output, shape index: {}]
  %s4 = sld [smem:[#allocation0]]
  $region42: #{tpu_custom_call.1} parent=0
    _
  %s6 = ssub.s32 1, %s4
  %s7 = scalar_select 0, %s6, %s4
  $region1: #{tpu_custom_call.1} parent=0
    #allocation3 [shape = 'u8[2048]{0}', space=vmem, size = 0x800, scoped, tag = 'input window, operand 0, single buffered']
    #allocation4 [shape = 's32[1]{0}', space=sflag, size = 0x4, scoped, tag = 'scoped memory for tpu_custom_call.1']
    #allocation5 [shape = 's32[1]{0}', space=sflag, size = 0x4, scoped, tag = 'scoped memory for tpu_custom_call.1']
    #allocation6 [shape = 'u8[32768]{0}', space=vmem, size = 0x8000, scoped, tag = 'input window, operand 1, single buffered']
    #allocation7 [shape = 's32[1]{0}', space=sflag, size = 0x4, scoped, tag = 'scoped memory for tpu_custom_call.1']
    #allocation8 [shape = 'u8[4096]{0}', space=vmem, size = 0x1000, scoped, tag = 'output window, operand 0, single buffered']
    %8 = vsyncpa [#allocation4], 0
    %9 = vsyncpa [#allocation7], 0
    %10 = vsyncpa [#allocation5], 0
    // Predicated region
    $region2: #{tpu_custom_call.1} parent=1 // pred_check
      _
    $region3: #{tpu_custom_call.1} parent=1 // pred_check_branch
      %12 = sbr.rel (0) target = $region5
    $region4: #{tpu_custom_call.1} parent=1 // pred_region
      %s14 = ssub.s32 64, 64
      %15 = vsyncadd [#allocation4], %s14
      %s17 = sshll.u32 [#allocation3], 4
      %s18 = int_to_ptr.vmem [resolvable:$true] %s17
      %20 = dma.hbm_to_vmem [thread:$0]  %s0, 64, %s18, [#allocation4]
    $region5: #{tpu_custom_call.1} parent=1 // pred_fallthru
      _
    // Predicated region
    $region6: #{tpu_custom_call.1} parent=1 // pred_check
      _
    $region7: #{tpu_custom_call.1} parent=1 // pred_check_branch
      %22 = sbr.rel (0) target = $region9
    $region8: #{tpu_custom_call.1} parent=1 // pred_region
      %s24 = ssub.s32 1024, 1024
      %25 = vsyncadd [#allocation7], %s24
      %s26 = sshll.u32 [#allocation6], 4
      %s27 = int_to_ptr.vmem [resolvable:$true] %s26
      %32 = dma.hbm_to_vmem [thread:$0]  %s1, 1024, %s27, [#allocation7], 64, 64, 4
    $region9: #{tpu_custom_call.1} parent=1 // pred_fallthru
      _
    // Predicated region
    $region10: #{tpu_custom_call.1} parent=1 // pred_check
      _
    $region11: #{tpu_custom_call.1} parent=1 // pred_check_branch
      %34 = sbr.rel (0) target = $region13
    $region12: #{tpu_custom_call.1} parent=1 // pred_region
      _
    $region13: #{tpu_custom_call.1} parent=1 // pred_fallthru
      _
    // Predicated region
    $region14: #{tpu_custom_call.1} parent=1 // pred_check
      _
    $region15: #{tpu_custom_call.1} parent=1 // pred_check_branch
      %36 = sbr.rel (0) target = $region17
    $region16: #{tpu_custom_call.1} parent=1 // pred_region
      %37 = dma.done [#allocation4], 64
    $region17: #{tpu_custom_call.1} parent=1 // pred_fallthru
      _
    // Predicated region
    $region18: #{tpu_custom_call.1} parent=1 // pred_check
      _
    $region19: #{tpu_custom_call.1} parent=1 // pred_check_branch
      %39 = sbr.rel (0) target = $region21
    $region20: #{tpu_custom_call.1} parent=1 // pred_region
      %40 = dma.done [#allocation7], 1024
    $region21: #{tpu_custom_call.1} parent=1 // pred_fallthru
      _
    %v42 = vld [vmem:[#allocation3] sm:$0xf]
    %v43 = vld [vmem:[#allocation6] sm:$0xf]
    %v44 = vld [vmem:[#allocation6 + $0x4] sm:$0xf]
    %v45 = vld [vmem:[#allocation6 + $0x8] sm:$0xf]
    %v46 = vld [vmem:[#allocation6 + $0xc] sm:$0xf]
    %v47 = vld [vmem:[#allocation6 + $0x10] sm:$0xf]
    %v48 = vld [vmem:[#allocation6 + $0x14] sm:$0xf]
    %v49 = vld [vmem:[#allocation6 + $0x18] sm:$0xf]
    %v50 = vld [vmem:[#allocation6 + $0x1c] sm:$0xf]
    %v51 = vld [vmem:[#allocation6 + $0x20] sm:$0xf]
    %v52 = vld [vmem:[#allocation6 + $0x24] sm:$0xf]
    %v53 = vld [vmem:[#allocation6 + $0x28] sm:$0xf]
    %v54 = vld [vmem:[#allocation6 + $0x2c] sm:$0xf]
    %v55 = vld [vmem:[#allocation6 + $0x30] sm:$0xf]
    %v56 = vld [vmem:[#allocation6 + $0x34] sm:$0xf]
    %v57 = vld [vmem:[#allocation6 + $0x38] sm:$0xf]
    %v58 = vld [vmem:[#allocation6 + $0x3c] sm:$0xf]
    %v75 = vunpack.c.l.b16 %v43
    %v76 = vunpack.c.l.b16 %v44
    %v77 = vunpack.c.l.b16 %v45
    %v78 = vunpack.c.l.b16 %v46
    %v79 = vunpack.c.l.b16 %v47
    %v80 = vunpack.c.l.b16 %v48
    %v81 = vunpack.c.l.b16 %v49
    %v82 = vunpack.c.l.b16 %v50
    %v83 = vunpack.c.l.b16 %v51
    %v84 = vunpack.c.l.b16 %v52
    %v85 = vunpack.c.l.b16 %v53
    %v86 = vunpack.c.l.b16 %v54
    %v87 = vunpack.c.l.b16 %v55
    %v88 = vunpack.c.l.b16 %v56
    %v89 = vunpack.c.l.b16 %v57
    %v90 = vunpack.c.l.b16 %v58
    %v91 = vpack.c.b16 %v76, %v75
    %v92 = vpack.c.b16 %v78, %v77
    %v93 = vpack.c.b16 %v80, %v79
    %v94 = vpack.c.b16 %v82, %v81
    %v95 = vpack.c.b16 %v84, %v83
    %v96 = vpack.c.b16 %v86, %v85
    %v97 = vpack.c.b16 %v88, %v87
    %v98 = vpack.c.b16 %v90, %v89
    %107 = vmatprep.subr.bf16.mxu0 0
    %108 = vmatpush1.bf16.msra.mxu0 %v98
    %109 = vmatprep.subr.bf16.mxu0 0
    %110 = vmatpush1.bf16.msra.mxu0 %v97
    %111 = vmatprep.subr.bf16.mxu0 0
    %112 = vmatpush1.bf16.msra.mxu0 %v96
    %113 = vmatprep.subr.bf16.mxu0 0
    %114 = vmatpush1.bf16.msra.mxu0 %v95
    %115 = vmatprep.subr.bf16.mxu0 0
    %116 = vmatpush1.bf16.msra.mxu0 %v94
    %117 = vmatprep.subr.bf16.mxu0 0
    %118 = vmatpush1.bf16.msra.mxu0 %v93
    %119 = vmatprep.subr.bf16.mxu0 0
    %120 = vmatpush1.bf16.msra.mxu0 %v92
    %121 = vmatprep.subr.bf16.mxu0 0
    %122 = vmatpush1.bf16.msra.mxu0 %v91
    %123 = vmatprep.subr.bf16.mxu0 0
    %124 = vmatpush2.bf16.msra.mxu0 0
    %125 = vmatprep.subr.bf16.mxu0 0
    %126 = vmatpush2.bf16.msra.mxu0 0
    %127 = vmatprep.subr.bf16.mxu0 0
    %128 = vmatpush2.bf16.msra.mxu0 0
    %129 = vmatprep.subr.bf16.mxu0 0
    %130 = vmatpush2.bf16.msra.mxu0 0
    %131 = vmatprep.subr.bf16.mxu0 0
    %132 = vmatpush2.bf16.msra.mxu0 0
    %133 = vmatprep.subr.bf16.mxu0 0
    %134 = vmatpush2.bf16.msra.mxu0 0
    %135 = vmatprep.subr.bf16.mxu0 0
    %136 = vmatpush2.bf16.msra.mxu0 0
    %137 = vmatprep.subr.bf16.mxu0 0
    %138 = vmatpush2.bf16.msra.mxu0 0
    %139 = vmatprep.mubr.bf16.mxu0 0
    %140 = vmatmul.mubr.bf16.gmra.mxu0 %v42
    %v141 = vpop.f32.mrf.mxu0
    %v142 = vadd.f32 0.0, %v141
    %v143 = vpop.f32.mrf.mxu0
    %v144 = vpop.f32.mrf.mxu0
    %v145 = vpop.f32.mrf.mxu0
    %146 = vdwg.mxu0
    %p147 = scmp.eq.s32.totalorder 0, 0
    // Predicated region
    $region22: #{tpu_custom_call.1} parent=1 // pred_check
      %p148 = pneg %p147
    $region23: #{tpu_custom_call.1} parent=1 // pred_check_branch
      %150 = sbr.rel (%p148) target = $region25
    $region24: #{tpu_custom_call.1} parent=1 // pred_region
      %151 = vst [vmem:[#allocation2] sm:$0xff] %v142
    $region25: #{tpu_custom_call.1} parent=1 // pred_fallthru
      _
    %p152 = scmp.gt.s32.totalorder 0, 0
    // Predicated region
    $region26: #{tpu_custom_call.1} parent=1 // pred_check
      %p153 = pneg %p152
    $region27: #{tpu_custom_call.1} parent=1 // pred_check_branch
      %155 = sbr.rel (%p153) target = $region29
    $region28: #{tpu_custom_call.1} parent=1 // pred_region
      %v156 = vld [vmem:[#allocation2] sm:$0xff]
      %v157 = vadd.f32 %v156, %v142
      %158 = vst [vmem:[#allocation2] sm:$0xff] %v157
    $region29: #{tpu_custom_call.1} parent=1 // pred_fallthru
      _
    // Predicated region
    $region30: #{tpu_custom_call.1} parent=1 // pred_check
      %p159 = pneg %p147
    $region31: #{tpu_custom_call.1} parent=1 // pred_check_branch
      %161 = sbr.rel (%p159) target = $region33
    $region32: #{tpu_custom_call.1} parent=1 // pred_region
      %v162 = vld [vmem:[#allocation2] sm:$0xff]
      %v163 = vld [vmem:[%s2] sm:$0x1]
      %v165 = vlaneseq
      %v166 = vshrl.u32 %v165, 7
      %v167 = vsub.s32 0, %v166
      %v168 = vrot.slane %v163, %v167
      %v170 = vadd.f32 %v162, %v168
      %v171 = vmax.f32 %v170, 0.0
      %172 = vst [vmem:[#allocation8] sm:$0xff] %v171
    $region33: #{tpu_custom_call.1} parent=1 // pred_fallthru
      _
    // Predicated region
    $region34: #{tpu_custom_call.1} parent=1 // pred_check
      _
    $region35: #{tpu_custom_call.1} parent=1 // pred_check_branch
      %174 = sbr.rel (0) target = $region37
    $region36: #{tpu_custom_call.1} parent=1 // pred_region
      %s176 = ssub.s32 128, 128
      %177 = vsyncadd [#allocation5], %s176
      %s179 = sshll.u32 [#allocation8], 4
      %s180 = int_to_ptr.vmem [resolvable:$true] %s179
      %182 = dma.vmem_to_hbm [thread:$0]  %s180, 128, %s3, [#allocation5]
    $region37: #{tpu_custom_call.1} parent=1 // pred_fallthru
      _
    // Predicated region
    $region38: #{tpu_custom_call.1} parent=1 // pred_check
      _
    $region39: #{tpu_custom_call.1} parent=1 // pred_check_branch
      %184 = sbr.rel (0) target = $region41
    $region40: #{tpu_custom_call.1} parent=1 // pred_region
      %185 = dma.done [#allocation5], 128
    $region41: #{tpu_custom_call.1} parent=1 // pred_fallthru
      _
    %186 = vsyncpa [#allocation4], 1
    %187 = vsyncpa [#allocation7], 1
    %188 = vsyncpa [#allocation5], 1

</llo_original>
